<compile_context>
chip_gen: v7x
topology: tpu7x:2x2x1
jax: 0.10.0
libtpu: 0.0.40
codegen_flags: <defaults>
</compile_context>

<pallas_src>
import jax
import jax.numpy as jnp
from jax import lax
from jax.experimental import pallas as pl
from jax.experimental.pallas import tpu as pltpu

K = 3  # Conv3d kernel size (3, 3, 3), padding=1, stride=1

_ROLL_DIR = None  # resolved once against the hardware roll convention


def _roll_direction():
    """Return d so that pltpu.roll(x, (d*s) % n, axis=-1)[..., i] == x[..., (i+s) % n]."""
    global _ROLL_DIR
    if _ROLL_DIR is None:
        def probe(x_ref, o_ref):
            o_ref[...] = pltpu.roll(x_ref[...], 1, axis=1)

        xp = jnp.tile(jnp.arange(128, dtype=jnp.float32)[None, :], (8, 1))
        yp = pl.pallas_call(
            probe, out_shape=jax.ShapeDtypeStruct((8, 128), jnp.float32))(xp)
        # np.roll convention puts x[n-1] at position 0 for shift=+1.
        _ROLL_DIR = -1 if float(yp[0, 0]) > 64.0 else 1
    return _ROLL_DIR


def _vmem_limit_bytes():
    """Scoped-VMEM cap: above the 16/32 MiB defaults, below physical VMEM."""
    try:
        info = pltpu.get_tpu_info()
        cap = getattr(info, "vmem_capacity_bytes", None)
        if cap:
            return int(min(cap * 3 // 4, 100 * 1024 * 1024))
    except Exception:
        pass
    return 64 * 1024 * 1024


def _pick_td(d, cin, cout, hw, in_bytes, out_bytes, vmem_budget, td_max=8):
    """Largest depth strip TD (divisor of D, <= td_max) whose step footprint fits."""
    per_td = hw * (
        2 * cin * in_bytes      # double-buffered center strip
        + 9 * cin * in_bytes    # (9*Cin, TD*HW) im2col stack
        + 6 * cin * in_bytes    # ext / rolled temporaries
        + 2 * cout * out_bytes  # double-buffered output block
        + 2 * cout * 4          # f32 accumulator + epilogue temp
    )
    cap = int(max(1, min(td_max, d, vmem_budget // max(per_td, 1))))
    for td in range(cap, 0, -1):
        if d % td == 0:
            return td
    return 1


def input_block_forward(x_ncdhw, conv_w, conv_b, bn_gamma, bn_beta, bn_mean,
                        bn_var, eps=1e-5, compute_dtype=jnp.float32,
                        out_dtype=None, td_max=8):
    """InputBlock forward.  x_ncdhw: (N, Cin, D, H, W) -> (N, Cout, D, H, W).

    BatchNorm runs in inference mode (running stats); its scale is folded into
    the conv weights, its shift + the conv bias into one per-channel bias.
    Use compute_dtype=jnp.bfloat16 / out_dtype=jnp.bfloat16 on v6e/v7x to
    halve operand/output HBM traffic; accumulation stays float32.
    """
    n, cin, d, h, w = x_ncdhw.shape
    cout = conv_w.shape[0]
    hw = h * w
    if out_dtype is None:
        out_dtype = compute_dtype
    # Lane-dense layout requirement for the (.., H*W)-minor blocks.
    # TODO(synk): general fallback path when H*W is not a multiple of 128.
    assert hw % 128 == 0, "H*W must be a multiple of 128"

    in_bytes = jnp.dtype(compute_dtype).itemsize
    out_bytes = jnp.dtype(out_dtype).itemsize
    vmem_limit = _vmem_limit_bytes()
    td = _pick_td(d, cin, cout, hw, in_bytes, out_bytes, vmem_limit // 2,
                  td_max=td_max)
    # TODO(synk): indivisible D falls back to a smaller divisor TD; add
    # in-kernel depth masking to support an arbitrary (ragged) last strip.
    n_db = d // td
    l_out = td * hw          # lanes of one output strip
    l_ext = (td + 2) * hw    # lanes of [prev halo | strip | next halo]
    roll_dir = _roll_direction()

    # --- host-side parameter folding ------------------------------------
    # PyTorch weight (Cout, Cin, kd, kh, kw) -> (kw, Cout, kh, kd, Cin) so the
    # contraction rows match the kernel's (kh, kd, cin) stack order.
    w9 = jnp.transpose(conv_w, (4, 0, 3, 2, 1)).reshape(K, cout, K * K * cin)
    scale = bn_gamma / jnp.sqrt(bn_var + eps)                      # (Cout,)
    w9 = (w9 * scale[None, :, None]).astype(compute_dtype)         # BN scale folded
    bias = ((conv_b - bn_mean) * scale + bn_beta).astype(jnp.float32)
    bias2 = bias.reshape(cout, 1)

    # Free reshape: NCDHW is already contiguous as (N, C, D*H*W).
    x2 = x_ncdhw.astype(compute_dtype).reshape(n, cin, d * hw)

    def kernel(xm_ref, xc_ref, xp_ref, w_ref, b_ref, o_ref):
        db = pl.program_id(1)
        n_blocks = pl.num_programs(1)
        dt = xc_ref.dtype

        # Depth halos, zero-masked at the volume boundaries.
        vp = (db > 0).astype(jnp.float32).astype(dt)
        vn = (db < n_blocks - 1).astype(jnp.float32).astype(dt)
        prev = xm_ref[0] * vp                                   # (Cin, HW)
        nxt = xp_ref[0] * vn                                    # (Cin, HW)
        ext = jnp.concatenate([prev, xc_ref[0], nxt], axis=1)   # (Cin, l_ext)

        # Lane-index derived H/W boundary masks (shared across depth slices).
        lane_ext = lax.broadcasted_iota(jnp.int32, (1, l_ext), 1)
        h_ext = (lane_ext // w) % h
        lane_out = lax.broadcasted_iota(jnp.int32, (1, l_out), 1)
        w_out = lane_out % w

        # Build the (9*Cin, TD*HW) stack: rows ordered (kh, kd, cin).
        parts = []
        for kh in range(K):
            sh = (kh - 1) * w                   # want value at lane i + sh
            if sh == 0:
                shifted = ext
            else:
                shifted = pltpu.roll(ext, (roll_dir * sh) % l_ext, axis=1)
                if kh == 0:
                    shifted = jnp.where(h_ext >= 1, shifted, 0)
                else:
                    shifted = jnp.where(h_ext < h - 1, shifted, 0)
            for kd in range(K):
                # Depth windows are 128-aligned lane slices (multiples of HW).
                parts.append(shifted[:, kd * hw:kd * hw + l_out])
        rhs9 = jnp.concatenate(parts, axis=0)   # (9*Cin, TD*HW)

        # 3 MXU matmuls (one per kw), K = 9*Cin, value accumulation in f32.
        acc = None
        for kw in range(K):
            sw = kw - 1
            if sw == 0:
                rhs = rhs9
            else:
                rolled = pltpu.roll(rhs9, (roll_dir * sw) % l_out, axis=1)
                if kw == 0:
                    rhs = jnp.where(w_out >= 1, rolled, 0)
                else:
                    rhs = jnp.where(w_out < w - 1, rolled, 0)
            contrib = jnp.dot(w_ref[kw], rhs,
                              preferred_element_type=jnp.float32)
            acc = contrib if acc is None else acc + contrib

        y = acc + b_ref[...]                    # folded BN shift + conv bias
        o_ref[0] = jnp.maximum(y, 0.0).astype(o_ref.dtype)

    d_last = d - 1
    cost = pl.CostEstimate(
        flops=2 * n * d * hw * cout * cin * K * K * K,
        transcendentals=0,
        bytes_accessed=int(n * cin * d * hw * in_bytes * (td + 2) // td
                           + n * cout * d * hw * out_bytes
                           + int(w9.size) * in_bytes),
    )

    out_flat = pl.pallas_call(
        kernel,
        out_shape=jax.ShapeDtypeStruct((n, cout, d * hw), out_dtype),
        grid_spec=pltpu.PrefetchScalarGridSpec(
            num_scalar_prefetch=0,
            grid=(n, n_db),
            in_specs=[
                # prev-depth halo slice (clamped; zero-masked at db == 0)
                pl.BlockSpec((1, cin, hw),
                             lambda ni, db: (ni, 0, jnp.maximum(db * td - 1, 0))),
                # center strip of TD depth slices
                # TODO(synk): pipeline_mode=pl.Buffered(3) here if DMA is still
                # exposed after strip blocking (watch VMEM headroom on v7x).
                pl.BlockSpec((1, cin, td * hw), lambda ni, db: (ni, 0, db)),
                # next-depth halo slice (clamped; zero-masked at db == last)
                pl.BlockSpec((1, cin, hw),
                             lambda ni, db: (ni, 0, jnp.minimum(db * td + td, d_last))),
                pl.BlockSpec((K, cout, K * K * cin), lambda ni, db: (0, 0, 0)),
                pl.BlockSpec((cout, 1), lambda ni, db: (0, 0)),
            ],
            out_specs=pl.BlockSpec((1, cout, td * hw), lambda ni, db: (ni, 0, db)),
        ),
        compiler_params=pltpu.CompilerParams(
            dimension_semantics=("parallel", "parallel"),
            vmem_limit_bytes=vmem_limit),
        cost_estimate=cost,
    )(x2, x2, x2, w9, bias2)

    # Free reshape: (N, Cout, D*H*W) is already the NCDHW memory layout.
    return out_flat.reshape(n, cout, d, h, w)


def reference_forward(x, conv_w, conv_b, gamma, beta, mean, var, eps=1e-5):
    y = lax.conv_general_dilated(
        x, conv_w, window_strides=(1, 1, 1),
        padding=((1, 1), (1, 1), (1, 1)),
        dimension_numbers=('NCDHW', 'OIDHW', 'NCDHW'),
        precision=lax.Precision.HIGHEST)
    y = y + conv_b.reshape(1, -1, 1, 1, 1)
    y = (y - mean.reshape(1, -1, 1, 1, 1)) / jnp.sqrt(
        var.reshape(1, -1, 1, 1, 1) + eps)
    y = y * gamma.reshape(1, -1, 1, 1, 1) + beta.reshape(1, -1, 1, 1, 1)
    return jnp.maximum(y, 0.0)


if __name__ == "__main__":
    N, Cin, Cout = 2, 4, 8
    D, H, W = 8, 16, 16

    key = jax.random.PRNGKey(0)
    k_x, k_w, k_b, k_g, k_be, k_m, k_v = jax.random.split(key, 7)

    x = jax.random.normal(k_x, (N, Cin, D, H, W), jnp.float32)

    # Deterministic synthetic parameters (shapes from nn.Conv3d / nn.BatchNorm3d).
    conv_w = jax.random.normal(k_w, (Cout, Cin, K, K, K), jnp.float32) * 0.1
    conv_b = jax.random.normal(k_b, (Cout,), jnp.float32) * 0.1
    bn_gamma = 1.0 + 0.1 * jax.random.normal(k_g, (Cout,), jnp.float32)
    bn_beta = 0.1 * jax.random.normal(k_be, (Cout,), jnp.float32)
    # BatchNorm applied in inference mode with these running stats.
    bn_mean = 0.1 * jax.random.normal(k_m, (Cout,), jnp.float32)
    bn_var = 1.0 + 0.1 * jax.random.uniform(k_v, (Cout,), jnp.float32)

    ref = reference_forward(x, conv_w, conv_b, bn_gamma, bn_beta,
                            bn_mean, bn_var)

    # float32 path: tight check against the XLA reference.
    out = input_block_forward(x, conv_w, conv_b, bn_gamma, bn_beta,
                              bn_mean, bn_var,
                              compute_dtype=jnp.float32,
                              out_dtype=jnp.float32)
    out = jax.block_until_ready(out)
    assert out.shape == (N, Cout, D, H, W)
    err = float(jnp.max(jnp.abs(out - ref)))
    assert jnp.allclose(out, ref, atol=1e-3, rtol=1e-3), err

    # bf16 operands + bf16 output (recommended production config on v6e/v7x):
    # halves operand/output HBM traffic; loose tolerance vs f32 reference.
    out_bf = input_block_forward(x, conv_w, conv_b, bn_gamma, bn_beta,
                                 bn_mean, bn_var,
                                 compute_dtype=jnp.bfloat16,
                                 out_dtype=jnp.bfloat16)
    out_bf = jax.block_until_ready(out_bf).astype(jnp.float32)
    err_bf = float(jnp.max(jnp.abs(out_bf - ref)))
    assert err_bf < 0.2, err_bf

    print("KERNEL_OK")
</pallas_src>

<mosaic_0001>
module attributes {stable_mosaic.version = 11 : i64} {
  func.func @probe(%arg0: memref<8x128xf32, #tpu.memory_space<vmem>>, %arg1: memref<8x128xf32, #tpu.memory_space<vmem>>) attributes {dimension_semantics = [], scalar_prefetch = 0 : i64, scratch_operands = 0 : i64, tpu.core_type = #tpu.core_type<tc>} {
    %c0 = arith.constant 0 : index
    %c0_0 = arith.constant 0 : index
    %0 = vector.load %arg0[%c0, %c0_0] : memref<8x128xf32, #tpu.memory_space<vmem>>, vector<8x128xf32>
    %c1_i32 = arith.constant 1 : i32
    %1 = tpu.dynamic_rotate %0 by %c1_i32 dim 1 : vector<8x128xf32>, i32 -> vector<8x128xf32>
    %c0_1 = arith.constant 0 : index
    %c0_2 = arith.constant 0 : index
    %2 = vector.load %arg1[%c0_1, %c0_2] : memref<8x128xf32, #tpu.memory_space<vmem>>, vector<8x128xf32>
    tpu.vector_store %arg1[%c0_1, %c0_2], %1 {strides = array<i32>} : memref<8x128xf32, #tpu.memory_space<vmem>>, vector<8x128xf32>,
    return
  }
}

</mosaic_0001>

<llo_original>
// kernel: tpu_custom_call.1
$region0: #{tpu_custom_call.1}
  #allocation0 [shape = 'u32[]', space=smem, size = 0x4, offset = 0x4, fixed_abs, tag = 'smem constant byte address 0x4 - core index']
  #allocation1 [shape = 'u32[144,128]{1,0:T(1,128)}', space=vmem, size = 0x12000, scoped, tag = 'internal scratch']
  %s0 = inlined_call_operand.hbm [shape: f32[8,128], index: 0, kind: input, shape index: {}]
  %s1 = inlined_call_operand.hbm [shape: f32[8,128], index: 1, kind: output, shape index: {}]
  %s2 = sld [smem:[#allocation0]]
  $region18: #{tpu_custom_call.1} parent=0
    _
  %s4 = ssub.s32 1, %s2
  %s5 = scalar_select 0, %s4, %s2
  $region1: #{tpu_custom_call.1} parent=0
    #allocation2 [shape = 'u8[4096]{0}', space=vmem, size = 0x1000, scoped, tag = 'input window, operand 0, single buffered']
    #allocation3 [shape = 's32[1]{0}', space=sflag, size = 0x4, scoped, tag = 'scoped memory for tpu_custom_call.1']
    #allocation4 [shape = 's32[1]{0}', space=sflag, size = 0x4, scoped, tag = 'scoped memory for tpu_custom_call.1']
    #allocation5 [shape = 'u8[4096]{0}', space=vmem, size = 0x1000, scoped, tag = 'output window, operand 0, single buffered']
    %6 = vsyncpa [#allocation3], 0
    %7 = vsyncpa [#allocation4], 0
    // Predicated region
    $region2: #{tpu_custom_call.1} parent=1 // pred_check
      _
    $region3: #{tpu_custom_call.1} parent=1 // pred_check_branch
      %9 = sbr.rel (0) target = $region5
    $region4: #{tpu_custom_call.1} parent=1 // pred_region
      %s11 = ssub.s32 128, 128
      %12 = vsyncadd [#allocation3], %s11
      %s14 = sshll.u32 [#allocation2], 4
      %s15 = int_to_ptr.vmem [resolvable:$true] %s14
      %17 = dma.hbm_to_vmem [thread:$0]  %s0, 128, %s15, [#allocation3]
    $region5: #{tpu_custom_call.1} parent=1 // pred_fallthru
      _
    // Predicated region
    $region6: #{tpu_custom_call.1} parent=1 // pred_check
      _
    $region7: #{tpu_custom_call.1} parent=1 // pred_check_branch
      %19 = sbr.rel (0) target = $region9
    $region8: #{tpu_custom_call.1} parent=1 // pred_region
      %20 = dma.done [#allocation3], 128
    $region9: #{tpu_custom_call.1} parent=1 // pred_fallthru
      _
    %v21 = vld [vmem:[#allocation2] sm:$0xff]
    %22 = vrot.lane.b32.xlu0 %v21, 1
    %v23 = vpop.permute.xlu0 %22
    %24 = vst [vmem:[#allocation5] sm:$0xff] %v23
    // Predicated region
    $region10: #{tpu_custom_call.1} parent=1 // pred_check
      _
    $region11: #{tpu_custom_call.1} parent=1 // pred_check_branch
      %26 = sbr.rel (0) target = $region13
    $region12: #{tpu_custom_call.1} parent=1 // pred_region
      %s28 = ssub.s32 128, 128
      %29 = vsyncadd [#allocation4], %s28
      %s31 = sshll.u32 [#allocation5], 4
      %s32 = int_to_ptr.vmem [resolvable:$true] %s31
      %34 = dma.vmem_to_hbm [thread:$0]  %s32, 128, %s1, [#allocation4]
    $region13: #{tpu_custom_call.1} parent=1 // pred_fallthru
      _
    // Predicated region
    $region14: #{tpu_custom_call.1} parent=1 // pred_check
      _
    $region15: #{tpu_custom_call.1} parent=1 // pred_check_branch
      %36 = sbr.rel (0) target = $region17
    $region16: #{tpu_custom_call.1} parent=1 // pred_region
      %37 = dma.done [#allocation4], 128
    $region17: #{tpu_custom_call.1} parent=1 // pred_fallthru
      _
    %38 = vsyncpa [#allocation3], 1
    %39 = vsyncpa [#allocation4], 1

</llo_original>
